<compile_context>
chip_gen: v6e
topology: v6e:2x2x1
jax: 0.10.0
libtpu: 0.0.40
codegen_flags: <defaults>
</compile_context>

<pallas_src>
import jax
import jax.numpy as jnp
from jax.experimental import pallas as pl
from jax.experimental.pallas import tpu as pltpu

# BGR weights used by tensor_to_y (applied here to RGB channel order).
_KB, _KG, _KR = 24.966, 128.553, 65.481
# /255 from "BGR / 255.0" folded into the weights.
_WR, _WG, _WB = _KR / 255.0, _KG / 255.0, _KB / 255.0

_NUM_PARTITIONS = 2  # leading "parallel" grid axis (2 TensorCores on v7x)


def _make_sse_kernel(h, tile_h, acc_rows, steps_per_part, src_is_int, tgt_is_int):
    folds = tile_h // acc_rows

    def to_y(ref, is_int):
        def chan(k):
            x = ref[k].astype(jnp.float32)
            # Emulate ToPILImage: x.mul(255).byte() truncates to 0..255.
            # Integer inputs are assumed to already be 0..255.
            return x if is_int else jnp.floor(x * 255.0)

        r, g, b = chan(0), chan(1), chan(2)
        return jnp.round(r * _WR + g * _WG + b * _WB + 16.0)

    def kernel(src_ref, tgt_ref, acc_ref):
        p = pl.program_id(0)
        i = pl.program_id(1)

        @pl.when(i == 0)
        def _():
            acc_ref[...] = jnp.zeros_like(acc_ref)

        d = to_y(src_ref, src_is_int) - to_y(tgt_ref, tgt_is_int)
        d2 = d * d

        # Mask rows past the true image height (ragged last tile and grid steps
        # whose index_map got clamped).
        row0 = (p * steps_per_part + i) * tile_h
        rows = row0 + jax.lax.broadcasted_iota(jnp.int32, d2.shape, 0)
        d2 = jnp.where(rows < h, d2, 0.0)

        # Fold (tile_h, W) -> (acc_rows, W) with VPU adds only: no cross-lane
        # reduce and no scalar SMEM read-modify-write in the hot loop.
        part = d2[0:acc_rows, :]
        for f in range(1, folds):
            part = part + d2[f * acc_rows:(f + 1) * acc_rows, :]
        acc_ref[0] += part

    return kernel


def psnr(source: jax.Array, target: jax.Array, *, tile_h=None) -> jax.Array:
    """PSNR between two CHW RGB images, matching the PyTorch module's math.

    Float inputs are expected in [0, 1]; integer inputs are treated as 0..255.
    """
    assert source.shape == target.shape
    c, h, w = source.shape
    assert c == 3

    itemsize = max(jnp.dtype(source.dtype).itemsize,
                   jnp.dtype(target.dtype).itemsize)

    # --- Tile-size selection (per-generation VMEM aware). ---
    try:
        phys_vmem = int(pltpu.get_tpu_info().vmem_capacity_bytes)
    except Exception:
        phys_vmem = 64 * 1024 * 1024  # conservative (v7x-sized) fallback
    budget = int(phys_vmem * 0.70)

    # Per H-row VMEM cost: 2 inputs x 2 pipeline buffers x 3 channels in the
    # native dtype, plus headroom for f32 intermediates inside the kernel.
    bytes_per_row = 2 * 2 * 3 * w * itemsize + 8 * w * 4

    if tile_h is None:
        if h <= 8:
            tile_h = h
        else:
            cap = max(8, (budget // bytes_per_row) // 8 * 8)
            tile_h = int(min(cap, (h // 8) * 8))
    assert tile_h == h or tile_h % 8 == 0

    acc_rows = 8 if tile_h >= 8 else tile_h
    n_h_blocks = int(pl.cdiv(h, tile_h))
    steps_per_part = int(pl.cdiv(n_h_blocks, _NUM_PARTITIONS))

    def img_index(p, i):
        hb = p * steps_per_part + i
        return (0, jnp.minimum(hb, n_h_blocks - 1), 0)

    img_spec = pl.BlockSpec((3, tile_h, w), img_index)
    acc_spec = pl.BlockSpec((1, acc_rows, w), lambda p, i: (p, 0, 0))

    kernel = _make_sse_kernel(
        h, tile_h, acc_rows, steps_per_part,
        bool(jnp.issubdtype(source.dtype, jnp.integer)),
        bool(jnp.issubdtype(target.dtype, jnp.integer)))

    vmem_limit = int(min(phys_vmem - (2 << 20), budget + (8 << 20)))

    partials = pl.pallas_call(
        kernel,
        out_shape=jax.ShapeDtypeStruct((_NUM_PARTITIONS, acc_rows, w), jnp.float32),
        grid_spec=pltpu.PrefetchScalarGridSpec(
            num_scalar_prefetch=0,
            grid=(_NUM_PARTITIONS, steps_per_part),
            in_specs=[img_spec, img_spec],
            out_specs=acc_spec,
        ),
        compiler_params=pltpu.CompilerParams(
            dimension_semantics=("parallel", "arbitrary"),
            vmem_limit_bytes=vmem_limit),
        cost_estimate=pl.CostEstimate(
            flops=20 * 3 * h * w,
            transcendentals=0,
            bytes_accessed=2 * 3 * h * w * itemsize),
    )(source, target)

    # Glue (matches nn.MSELoss over the (1, H, W) Y image): single final reduce.
    sse = jnp.sum(partials)
    mse = sse / jnp.float32(h * w)
    return 10.0 * jnp.log10(1.0 / mse)


def _ref_psnr(src, tgt):
    """Pure-JAX reference of the same math (no Pallas)."""
    def to_y(x):
        q = x.astype(jnp.float32)
        if not jnp.issubdtype(x.dtype, jnp.integer):
            q = jnp.floor(q * 255.0)
        return jnp.round(q[0] * _WR + q[1] * _WG + q[2] * _WB + 16.0)

    mse = jnp.mean((to_y(src) - to_y(tgt)) ** 2)
    return 10.0 * jnp.log10(1.0 / mse)


if __name__ == "__main__":
    key = jax.random.PRNGKey(0)
    k1, k2, k3, k4 = jax.random.split(key, 4)

    # Primary check: small CHW RGB image, float32 in [0, 1].
    src = jax.random.uniform(k1, (3, 16, 16), dtype=jnp.float32)
    tgt = jax.random.uniform(k2, (3, 16, 16), dtype=jnp.float32)
    out = jax.block_until_ready(psnr(src, tgt))
    ref = _ref_psnr(src, tgt)
    assert jnp.allclose(out, ref, rtol=1e-5, atol=1e-3), (out, ref)

    # Ragged-height check (exercises the masked last tile / clamped index_map).
    src2 = jax.random.uniform(k3, (3, 20, 16), dtype=jnp.float32)
    tgt2 = jax.random.uniform(k4, (3, 20, 16), dtype=jnp.float32)
    out2 = jax.block_until_ready(psnr(src2, tgt2))
    ref2 = _ref_psnr(src2, tgt2)
    assert jnp.allclose(out2, ref2, rtol=1e-5, atol=1e-3), (out2, ref2)

    print("KERNEL_OK")
</pallas_src>

<mosaic_0001>
module attributes {stable_mosaic.version = 11 : i64} {
  func.func @kernel(%arg0: i32, %arg1: i32, %arg2: memref<3x16x16xf32, #tpu.memory_space<vmem>>, %arg3: memref<3x16x16xf32, #tpu.memory_space<vmem>>, %arg4: memref<1x8x16xf32, #tpu.memory_space<vmem>>) attributes {dimension_semantics = [#tpu.dimension_semantics<parallel>, #tpu.dimension_semantics<arbitrary>], iteration_bounds = array<i64: 2, 1>, scalar_prefetch = 0 : i64, scratch_operands = 0 : i64, tpu.core_type = #tpu.core_type<tc>, window_params = [{transform_indices = @transform_0, window_bounds = array<i64: 3, 16, 16>}, {transform_indices = @transform_1, window_bounds = array<i64: 3, 16, 16>}, {transform_indices = @transform_2, window_bounds = array<i64: 1, 8, 16>}]} {
    %c0_i32 = arith.constant 0 : i32
    %0 = arith.cmpi eq, %arg1, %c0_i32 : i32
    %1 = arith.extui %0 : i1 to i32
    %c0_i32_0 = arith.constant 0 : i32
    %2 = arith.cmpi ne, %1, %c0_i32_0 : i32
    scf.if %2 {
      %cst_37 = arith.constant 0.000000e+00 : f32
      %76 = vector.broadcast %cst_37 : f32 to vector<1x8x16xf32>
      %c0_38 = arith.constant 0 : index
      %c0_39 = arith.constant 0 : index
      %c0_40 = arith.constant 0 : index
      %77 = vector.load %arg4[%c0_38, %c0_39, %c0_40] : memref<1x8x16xf32, #tpu.memory_space<vmem>>, vector<1x8x16xf32>
      tpu.vector_store %arg4[%c0_38, %c0_39, %c0_40], %76 {strides = array<i32>} : memref<1x8x16xf32, #tpu.memory_space<vmem>>, vector<1x8x16xf32>,
    } else {
    }
    %c0 = arith.constant 0 : index
    %c0_1 = arith.constant 0 : index
    %c0_2 = arith.constant 0 : index
    %3 = vector.load %arg2[%c0, %c0_1, %c0_2] : memref<3x16x16xf32, #tpu.memory_space<vmem>>, vector<1x16x16xf32>
    %4 = vector.shape_cast %3 : vector<1x16x16xf32> to vector<16x16xf32>
    %cst = arith.constant 2.550000e+02 : f32
    %5 = vector.broadcast %cst : f32 to vector<16x16xf32>
    %6 = arith.mulf %4, %5 : vector<16x16xf32>
    %7 = math.floor %6 : vector<16x16xf32>
    %c1 = arith.constant 1 : index
    %c0_3 = arith.constant 0 : index
    %c0_4 = arith.constant 0 : index
    %8 = vector.load %arg2[%c1, %c0_3, %c0_4] : memref<3x16x16xf32, #tpu.memory_space<vmem>>, vector<1x16x16xf32>
    %9 = vector.shape_cast %8 : vector<1x16x16xf32> to vector<16x16xf32>
    %cst_5 = arith.constant 2.550000e+02 : f32
    %10 = vector.broadcast %cst_5 : f32 to vector<16x16xf32>
    %11 = arith.mulf %9, %10 : vector<16x16xf32>
    %12 = math.floor %11 : vector<16x16xf32>
    %c2 = arith.constant 2 : index
    %c0_6 = arith.constant 0 : index
    %c0_7 = arith.constant 0 : index
    %13 = vector.load %arg2[%c2, %c0_6, %c0_7] : memref<3x16x16xf32, #tpu.memory_space<vmem>>, vector<1x16x16xf32>
    %14 = vector.shape_cast %13 : vector<1x16x16xf32> to vector<16x16xf32>
    %cst_8 = arith.constant 2.550000e+02 : f32
    %15 = vector.broadcast %cst_8 : f32 to vector<16x16xf32>
    %16 = arith.mulf %14, %15 : vector<16x16xf32>
    %17 = math.floor %16 : vector<16x16xf32>
    %cst_9 = arith.constant 0.256788224 : f32
    %18 = vector.broadcast %cst_9 : f32 to vector<16x16xf32>
    %19 = arith.mulf %7, %18 : vector<16x16xf32>
    %cst_10 = arith.constant 0.50412941 : f32
    %20 = vector.broadcast %cst_10 : f32 to vector<16x16xf32>
    %21 = arith.mulf %12, %20 : vector<16x16xf32>
    %22 = arith.addf %19, %21 : vector<16x16xf32>
    %cst_11 = arith.constant 0.0979058817 : f32
    %23 = vector.broadcast %cst_11 : f32 to vector<16x16xf32>
    %24 = arith.mulf %17, %23 : vector<16x16xf32>
    %25 = arith.addf %22, %24 : vector<16x16xf32>
    %cst_12 = arith.constant 1.600000e+01 : f32
    %26 = vector.broadcast %cst_12 : f32 to vector<16x16xf32>
    %27 = arith.addf %25, %26 : vector<16x16xf32>
    %28 = math.roundeven %27 : vector<16x16xf32>
    %c0_13 = arith.constant 0 : index
    %c0_14 = arith.constant 0 : index
    %c0_15 = arith.constant 0 : index
    %29 = vector.load %arg3[%c0_13, %c0_14, %c0_15] : memref<3x16x16xf32, #tpu.memory_space<vmem>>, vector<1x16x16xf32>
    %30 = vector.shape_cast %29 : vector<1x16x16xf32> to vector<16x16xf32>
    %cst_16 = arith.constant 2.550000e+02 : f32
    %31 = vector.broadcast %cst_16 : f32 to vector<16x16xf32>
    %32 = arith.mulf %30, %31 : vector<16x16xf32>
    %33 = math.floor %32 : vector<16x16xf32>
    %c1_17 = arith.constant 1 : index
    %c0_18 = arith.constant 0 : index
    %c0_19 = arith.constant 0 : index
    %34 = vector.load %arg3[%c1_17, %c0_18, %c0_19] : memref<3x16x16xf32, #tpu.memory_space<vmem>>, vector<1x16x16xf32>
    %35 = vector.shape_cast %34 : vector<1x16x16xf32> to vector<16x16xf32>
    %cst_20 = arith.constant 2.550000e+02 : f32
    %36 = vector.broadcast %cst_20 : f32 to vector<16x16xf32>
    %37 = arith.mulf %35, %36 : vector<16x16xf32>
    %38 = math.floor %37 : vector<16x16xf32>
    %c2_21 = arith.constant 2 : index
    %c0_22 = arith.constant 0 : index
    %c0_23 = arith.constant 0 : index
    %39 = vector.load %arg3[%c2_21, %c0_22, %c0_23] : memref<3x16x16xf32, #tpu.memory_space<vmem>>, vector<1x16x16xf32>
    %40 = vector.shape_cast %39 : vector<1x16x16xf32> to vector<16x16xf32>
    %cst_24 = arith.constant 2.550000e+02 : f32
    %41 = vector.broadcast %cst_24 : f32 to vector<16x16xf32>
    %42 = arith.mulf %40, %41 : vector<16x16xf32>
    %43 = math.floor %42 : vector<16x16xf32>
    %cst_25 = arith.constant 0.256788224 : f32
    %44 = vector.broadcast %cst_25 : f32 to vector<16x16xf32>
    %45 = arith.mulf %33, %44 : vector<16x16xf32>
    %cst_26 = arith.constant 0.50412941 : f32
    %46 = vector.broadcast %cst_26 : f32 to vector<16x16xf32>
    %47 = arith.mulf %38, %46 : vector<16x16xf32>
    %48 = arith.addf %45, %47 : vector<16x16xf32>
    %cst_27 = arith.constant 0.0979058817 : f32
    %49 = vector.broadcast %cst_27 : f32 to vector<16x16xf32>
    %50 = arith.mulf %43, %49 : vector<16x16xf32>
    %51 = arith.addf %48, %50 : vector<16x16xf32>
    %cst_28 = arith.constant 1.600000e+01 : f32
    %52 = vector.broadcast %cst_28 : f32 to vector<16x16xf32>
    %53 = arith.addf %51, %52 : vector<16x16xf32>
    %54 = math.roundeven %53 : vector<16x16xf32>
    %55 = arith.subf %28, %54 : vector<16x16xf32>
    %56 = arith.mulf %55, %55 : vector<16x16xf32>
    %c1_i32 = arith.constant 1 : i32
    %57 = arith.muli %arg0, %c1_i32 : i32
    %58 = arith.addi %57, %arg1 : i32
    %c16_i32 = arith.constant 16 : i32
    %59 = arith.muli %58, %c16_i32 : i32
    %60 = tpu.iota {dimensions = array<i32: 0>} : vector<16x16xi32>
    %61 = vector.broadcast %59 : i32 to vector<16x16xi32>
    %62 = arith.addi %61, %60 : vector<16x16xi32>
    %c16_i32_29 = arith.constant 16 : i32
    %63 = vector.broadcast %c16_i32_29 : i32 to vector<16x16xi32>
    %64 = arith.cmpi slt, %62, %63 : vector<16x16xi32>
    %cst_30 = arith.constant 0.000000e+00 : f32
    %65 = vector.broadcast %cst_30 : f32 to vector<16x16xf32>
    %66 = arith.select %64, %56, %65 : vector<16x16xi1>, vector<16x16xf32>
    %67 = vector.extract_strided_slice %66 {offsets = [0, 0], sizes = [8, 16], strides = [1, 1]} : vector<16x16xf32> to vector<8x16xf32>
    %68 = vector.extract_strided_slice %66 {offsets = [8, 0], sizes = [8, 16], strides = [1, 1]} : vector<16x16xf32> to vector<8x16xf32>
    %69 = arith.addf %67, %68 : vector<8x16xf32>
    %c0_31 = arith.constant 0 : index
    %c0_32 = arith.constant 0 : index
    %c0_33 = arith.constant 0 : index
    %70 = vector.load %arg4[%c0_31, %c0_32, %c0_33] : memref<1x8x16xf32, #tpu.memory_space<vmem>>, vector<1x8x16xf32>
    %71 = vector.shape_cast %70 : vector<1x8x16xf32> to vector<8x16xf32>
    %72 = arith.addf %71, %69 : vector<8x16xf32>
    %c0_34 = arith.constant 0 : index
    %c0_35 = arith.constant 0 : index
    %c0_36 = arith.constant 0 : index
    %73 = vector.load %arg4[%c0_34, %c0_35, %c0_36] : memref<1x8x16xf32, #tpu.memory_space<vmem>>, vector<1x8x16xf32>
    %74 = vector.shape_cast %73 : vector<1x8x16xf32> to vector<8x16xf32>
    %75 = vector.shape_cast %72 : vector<8x16xf32> to vector<1x8x16xf32>
    tpu.vector_store %arg4[%c0_34, %c0_35, %c0_36], %75 {strides = array<i32>} : memref<1x8x16xf32, #tpu.memory_space<vmem>>, vector<1x8x16xf32>,
    return
  }
  func.func @transform_0(%arg0: i32, %arg1: i32) -> (i32, i32, i32) {
    %c1_i32 = arith.constant 1 : i32
    %0 = arith.muli %arg0, %c1_i32 : i32
    %1 = arith.addi %0, %arg1 : i32
    %c0_i32 = arith.constant 0 : i32
    %2 = arith.minsi %1, %c0_i32 : i32
    %c0_i32_0 = arith.constant 0 : i32
    %c0_i32_1 = arith.constant 0 : i32
    %c0_i32_2 = arith.constant 0 : i32
    return %c0_i32_0, %2, %c0_i32_1 : i32, i32, i32
  }
  func.func @transform_1(%arg0: i32, %arg1: i32) -> (i32, i32, i32) {
    %c1_i32 = arith.constant 1 : i32
    %0 = arith.muli %arg0, %c1_i32 : i32
    %1 = arith.addi %0, %arg1 : i32
    %c0_i32 = arith.constant 0 : i32
    %2 = arith.minsi %1, %c0_i32 : i32
    %c0_i32_0 = arith.constant 0 : i32
    %c0_i32_1 = arith.constant 0 : i32
    %c0_i32_2 = arith.constant 0 : i32
    return %c0_i32_0, %2, %c0_i32_1 : i32, i32, i32
  }
  func.func @transform_2(%arg0: i32, %arg1: i32) -> (i32, i32, i32) {
    %c0_i32 = arith.constant 0 : i32
    %c0_i32_0 = arith.constant 0 : i32
    %c0_i32_1 = arith.constant 0 : i32
    return %arg0, %c0_i32, %c0_i32_0 : i32, i32, i32
  }
}

</mosaic_0001>

<llo_original>
// kernel: tpu_custom_call.1
$region0: #{tpu_custom_call.1}
  #allocation0 [shape = 'u32[]', space=smem, size = 0x4, offset = 0x4, fixed_abs, tag = 'smem constant byte address 0x4 - core index']
  #allocation1 [shape = 'u32[144,128]{1,0:T(1,128)}', space=vmem, size = 0x12000, scoped, tag = 'internal scratch']
  %s0 = inlined_call_operand.hbm [shape: f32[3,16,16], index: 0, kind: input, shape index: {}]
  %s1 = inlined_call_operand.hbm [shape: f32[3,16,16], index: 1, kind: input, shape index: {}]
  %s2 = inlined_call_operand.hbm [shape: f32[2,8,16], index: 2, kind: output, shape index: {}]
  %s3 = sld [smem:[#allocation0]]
  $region53: #{tpu_custom_call.1} parent=0
    _
  %s5 = ssub.s32 1, %s3
  %s6 = scalar_select 0, %s5, %s3
  $region1: #{tpu_custom_call.1} parent=0
    #allocation2 [shape = 'u8[49152]{0}', space=vmem, size = 0xc000, scoped, tag = 'input window, operand 0']
    #allocation3 [shape = 's32[2]{0}', space=sflag, size = 0x8, scoped, tag = 'scoped memory for tpu_custom_call.1']
    #allocation4 [shape = 's32[2]{0}', space=sflag, size = 0x8, scoped, tag = 'scoped memory for tpu_custom_call.1']
    #allocation5 [shape = 'u8[49152]{0}', space=vmem, size = 0xc000, scoped, tag = 'input window, operand 1']
    #allocation6 [shape = 's32[2]{0}', space=sflag, size = 0x8, scoped, tag = 'scoped memory for tpu_custom_call.1']
    #allocation7 [shape = 'u8[8192]{0}', space=vmem, size = 0x2000, scoped, tag = 'output window, operand 0']
    %7 = vsyncpa [#allocation3], 0
    %s8 = scalar_lea.sflag [#allocation3], 1
    %9 = vsyncpa %s8, 0
    %10 = vsyncpa [#allocation6], 0
    %s11 = scalar_lea.sflag [#allocation6], 1
    %12 = vsyncpa %s11, 0
    %13 = vsyncpa [#allocation4], 0
    %s14 = scalar_lea.sflag [#allocation4], 1
    %15 = vsyncpa %s14, 0
    loop: start=0, step=1, limit=4
    $region2: #{tpu_custom_call.1} parent=1 // loop_pre_header
      _
    $region3: #{tpu_custom_call.1} parent=1 // loop_header
      %s17 = sphi 0, %s21
      %p18 = scmp.ge.s32.totalorder %s17, 4
      %s24 = sphi 0, %s36
      %s25 = sphi 0, %s32
      %s26 = sphi 0, %s24
      %s27 = sphi 0, %s25
      %s28 = sphi 0, %s26
      %s29 = sphi 0, %s27
      %s45 = sphi 0, %s47
      %s48 = sphi 0, %s45
      %s49 = sphi 0, %s48
      %s65 = sphi 0, %s49
      %s77 = sphi 0, %s79
      %s80 = sphi 0, %s77
      %s81 = sphi 0, %s80
      %s97 = sphi 0, %s81
      %s103 = sphi 0, %s105
      %s106 = sphi 0, %s103
      %s107 = sphi 0, %s106
      %s123 = sphi 0, %s107
    $region4: #{tpu_custom_call.1} parent=1 // loop_header_branch
      %20 = sbr.rel (%p18) target = $region8
    $region5: #{tpu_custom_call.1} parent=1 // loop_body
      %s22 = ssub.s32 %s17, 1
      %s23 = ssub.s32 %s17, 2
      %s30 = sadd.s32 1, %s25
      %p31 = scmp.ge.s32.totalorder %s30, 1
      %s32 = scalar_select %p31, 0, %s30
      %s33 = sadd.s32 1, %s24
      %s34 = scalar_select %p31, %s33, %s24
      %p35 = scmp.ge.s32.totalorder %s34, 2
      %s36 = scalar_select %p35, 0, %s34
      %s37 = sadd.s32 %s24, %s25
      %p38 = scmp.lt.s32.totalorder %s37, 0
      %s39 = scalar_select %p38, %s37, 0
      %s40 = sadd.s32 %s36, %s32
      %p41 = scmp.lt.s32.totalorder %s40, 0
      %s42 = scalar_select %p41, %s40, 0
      %s43 = ssub.s32 %s39, %s42
      %p44 = scmp.eq.s32.totalorder %s43, 0
      %s46 = sadd.s32 %s45, 1
      %s47 = scalar_select %p44, %s45, %s46
      %p50 = pneg %p44
      %p51 = scmp.eq.s32.totalorder %s17, 1
      %p52 = por %p50, %p51
      %p53 = scmp.ne.s32.totalorder %s45, %s48
      %p54 = scmp.eq.s32.totalorder %s17, 0
      %p55 = por %p53, %p54
      %p56 = scmp.ne.s32.totalorder %s45, %s48
      %p57 = scmp.eq.s32.totalorder %s22, 1
      %p58 = por %p56, %p57
      %p59 = scmp.ne.s32.totalorder %s48, %s49
      %p60 = scmp.eq.s32.totalorder %s22, 0
      %p61 = por %p59, %p60
      %p62 = scmp.ne.s32.totalorder %s48, %s49
      %p63 = scmp.eq.s32.totalorder %s23, 1
      %p64 = por %p62, %p63
      %p66 = scmp.ne.s32.totalorder %s49, %s65
      %p67 = scmp.eq.s32.totalorder %s23, 0
      %p68 = por %p66, %p67
      %s69 = sadd.s32 %s24, %s25
      %p70 = scmp.lt.s32.totalorder %s69, 0
      %s71 = scalar_select %p70, %s69, 0
      %s72 = sadd.s32 %s36, %s32
      %p73 = scmp.lt.s32.totalorder %s72, 0
      %s74 = scalar_select %p73, %s72, 0
      %s75 = ssub.s32 %s71, %s74
      %p76 = scmp.eq.s32.totalorder %s75, 0
      %s78 = sadd.s32 %s77, 1
      %s79 = scalar_select %p76, %s77, %s78
      %p82 = pneg %p76
      %p83 = scmp.eq.s32.totalorder %s17, 1
      %p84 = por %p82, %p83
      %p85 = scmp.ne.s32.totalorder %s77, %s80
      %p86 = scmp.eq.s32.totalorder %s17, 0
      %p87 = por %p85, %p86
      %p88 = scmp.ne.s32.totalorder %s77, %s80
      %p89 = scmp.eq.s32.totalorder %s22, 1
      %p90 = por %p88, %p89
      %p91 = scmp.ne.s32.totalorder %s80, %s81
      %p92 = scmp.eq.s32.totalorder %s22, 0
      %p93 = por %p91, %p92
      %p94 = scmp.ne.s32.totalorder %s80, %s81
      %p95 = scmp.eq.s32.totalorder %s23, 1
      %p96 = por %p94, %p95
      %p98 = scmp.ne.s32.totalorder %s81, %s97
      %p99 = scmp.eq.s32.totalorder %s23, 0
      %p100 = por %p98, %p99
      %s101 = ssub.s32 %s24, %s36
      %p102 = scmp.eq.s32.totalorder %s101, 0
      %s104 = sadd.s32 %s103, 1
      %s105 = scalar_select %p102, %s103, %s104
      %p108 = pneg %p102
      %p109 = scmp.eq.s32.totalorder %s17, 1
      %p110 = por %p108, %p109
      %p111 = scmp.ne.s32.totalorder %s103, %s106
      %p112 = scmp.eq.s32.totalorder %s17, 0
      %p113 = por %p111, %p112
      %p114 = scmp.ne.s32.totalorder %s103, %s106
      %p115 = scmp.eq.s32.totalorder %s22, 1
      %p116 = por %p114, %p115
      %p117 = scmp.ne.s32.totalorder %s106, %s107
      %p118 = scmp.eq.s32.totalorder %s22, 0
      %p119 = por %p117, %p118
      %p120 = scmp.ne.s32.totalorder %s106, %s107
      %p121 = scmp.eq.s32.totalorder %s23, 1
      %p122 = por %p120, %p121
      %p124 = scmp.ne.s32.totalorder %s107, %s123
      %p125 = scmp.eq.s32.totalorder %s23, 0
      %p126 = por %p124, %p125
      %p127 = scmp.le.s32.totalorder 1, %s17
      %p128 = scmp.lt.s32.totalorder %s17, 3
      %p129 = pnand %p127, %p128
      %p130 = pneg %p129
      // Predicated region
      $region9: #{tpu_custom_call.1} parent=5 // pred_check
        _
      $region10: #{tpu_custom_call.1} parent=5 // pred_check_branch
        %132 = sbr.rel (%p129) target = $region12
      $region11: #{tpu_custom_call.1} parent=5 // pred_region
        %s133 = ssub.s32 %s17, 1
      $region12: #{tpu_custom_call.1} parent=5 // pred_fallthru
        _
      %p134 = scmp.lt.s32.totalorder %s17, 2
      // Predicated region
      $region13: #{tpu_custom_call.1} parent=5 // pred_check
        %p135 = pneg %p134
      $region14: #{tpu_custom_call.1} parent=5 // pred_check_branch
        %137 = sbr.rel (%p135) target = $region16
      $region15: #{tpu_custom_call.1} parent=5 // pred_region
        // Predicated region
        $region17: #{tpu_custom_call.1} parent=15 // pred_check
          %p138 = pneg %p55
        $region18: #{tpu_custom_call.1} parent=15 // pred_check_branch
          %140 = sbr.rel (%p138) target = $region20
        $region19: #{tpu_custom_call.1} parent=15 // pred_region
          %s141 = sand.u32 %s45, 1
          %s142 = scalar_lea.sflag [#allocation3], %s141
          %s143 = sand.u32 %s45, 1
          %s144 = smul.addr %s143, 48
          %s145 = scalar_lea.vmem [#allocation2], %s144
          %s146 = sadd.s32 %s24, %s25
          %p147 = scmp.lt.s32.totalorder %s146, 0
          %s148 = scalar_select %p147, %s146, 0
          %s149 = smul.u32 2, %s148
          %s151 = ssub.s32 768, 768
          %152 = vsyncadd %s142, %s151
          %s153 = smul.addr %s149, 128
          %s154 = scalar_lea.hbm %s0, %s153
          %s155 = sshll.u32 %s145, 4
          %s156 = int_to_ptr.vmem [resolvable:$true] %s155
          %161 = dma.hbm_to_vmem [thread:$0]  %s154, 768, %s156, %s142, 128, 128, 8
        $region20: #{tpu_custom_call.1} parent=15 // pred_fallthru
          _
        // Predicated region
        $region21: #{tpu_custom_call.1} parent=15 // pred_check
          %p162 = pneg %p87
        $region22: #{tpu_custom_call.1} parent=15 // pred_check_branch
          %164 = sbr.rel (%p162) target = $region24
        $region23: #{tpu_custom_call.1} parent=15 // pred_region
          %s165 = sand.u32 %s77, 1
          %s166 = scalar_lea.sflag [#allocation6], %s165
          %s167 = sand.u32 %s77, 1
          %s168 = smul.addr %s167, 48
          %s169 = scalar_lea.vmem [#allocation5], %s168
          %s170 = sadd.s32 %s24, %s25
          %p171 = scmp.lt.s32.totalorder %s170, 0
          %s172 = scalar_select %p171, %s170, 0
          %s173 = smul.u32 2, %s172
          %s175 = ssub.s32 768, 768
          %176 = vsyncadd %s166, %s175
          %s177 = smul.addr %s173, 128
          %s178 = scalar_lea.hbm %s1, %s177
          %s179 = sshll.u32 %s169, 4
          %s180 = int_to_ptr.vmem [resolvable:$true] %s179
          %185 = dma.hbm_to_vmem [thread:$0]  %s178, 768, %s180, %s166, 128, 128, 8
        $region24: #{tpu_custom_call.1} parent=15 // pred_fallthru
          _
      $region16: #{tpu_custom_call.1} parent=5 // pred_fallthru
        _
      %p186 = scmp.le.s32.totalorder 1, %s17
      %p187 = scmp.lt.s32.totalorder %s17, 3
      %p188 = pnand %p186, %p187
      %p189 = pneg %p188
      // Predicated region
      $region25: #{tpu_custom_call.1} parent=5 // pred_check
        _
      $region26: #{tpu_custom_call.1} parent=5 // pred_check_branch
        %191 = sbr.rel (%p188) target = $region28
      $region27: #{tpu_custom_call.1} parent=5 // pred_region
        %s192 = ssub.s32 %s17, 1
        %s193 = sand.u32 %s48, 1
        %s194 = scalar_lea.sflag [#allocation3], %s193
        %s195 = sand.u32 %s48, 1
        %s196 = smul.addr %s195, 48
        %s197 = scalar_lea.vmem [#allocation2], %s196
        // Predicated region
        $region29: #{tpu_custom_call.1} parent=27 // pred_check
          %p198 = pneg %p61
        $region30: #{tpu_custom_call.1} parent=27 // pred_check_branch
          %200 = sbr.rel (%p198) target = $region32
        $region31: #{tpu_custom_call.1} parent=27 // pred_region
          %201 = dma.done %s194, 768
        $region32: #{tpu_custom_call.1} parent=27 // pred_fallthru
          _
        %s202 = sand.u32 %s80, 1
        %s203 = scalar_lea.sflag [#allocation6], %s202
        %s204 = sand.u32 %s80, 1
        %s205 = smul.addr %s204, 48
        %s206 = scalar_lea.vmem [#allocation5], %s205
        // Predicated region
        $region33: #{tpu_custom_call.1} parent=27 // pred_check
          %p207 = pneg %p93
        $region34: #{tpu_custom_call.1} parent=27 // pred_check_branch
          %209 = sbr.rel (%p207) target = $region36
        $region35: #{tpu_custom_call.1} parent=27 // pred_region
          %210 = dma.done %s203, 768
        $region36: #{tpu_custom_call.1} parent=27 // pred_fallthru
          _
        %s211 = sand.u32 %s48, 1
        %s212 = scalar_lea.sflag [#allocation3], %s211
        %s213 = sand.u32 %s48, 1
        %s214 = smul.addr %s213, 48
        %s215 = scalar_lea.vmem [#allocation2], %s214
        %p216 = pneg %p61
        %p217 = pneg %p58
        %s218 = sand.u32 %s80, 1
        %s219 = scalar_lea.sflag [#allocation6], %s218
        %s220 = sand.u32 %s80, 1
        %s221 = smul.addr %s220, 48
        %s222 = scalar_lea.vmem [#allocation5], %s221
        %p223 = pneg %p93
        %p224 = pneg %p90
        %p225 = pneg %p119
        %p226 = pneg %p116
        %s227 = sand.u32 %s106, 1
        %s228 = scalar_lea.sflag [#allocation4], %s227
        %s229 = sand.u32 %s106, 1
        %s230 = smul.addr %s229, 8
        %s231 = scalar_lea.vmem [#allocation7], %s230
        %s232 = sadd.s32 %s26, %s27
        %p233 = scmp.lt.s32.totalorder %s232, 0
        %s234 = scalar_select %p233, %s232, 0
        %s235 = smul.u32 2, %s234
        %s236 = sadd.s32 %s26, %s27
        %p237 = scmp.lt.s32.totalorder %s236, 0
        %s238 = scalar_select %p237, %s236, 0
        %s239 = smul.u32 2, %s238
        %p240 = scmp.eq.s32.totalorder %s27, 0
        // Predicated region
        $region37: #{tpu_custom_call.1} parent=27 // pred_check
          %p241 = pneg %p240
        $region38: #{tpu_custom_call.1} parent=27 // pred_check_branch
          %243 = sbr.rel (%p241) target = $region40
        $region39: #{tpu_custom_call.1} parent=27 // pred_region
          %vm244 = vcmask 130048
          %245 = vst.msk [vmem:[%s231] sm:$0xff] %vm244, 0.0
        $region40: #{tpu_custom_call.1} parent=27 // pred_fallthru
          _
        %v246 = vld [vmem:[%s197] sm:$0xff]
        %v247 = vld [vmem:[%s197 + $0x8] sm:$0xff]
        %v248 = vmul.f32 %v246, 255.0
        %v249 = vmul.f32 %v247, 255.0
        %v250 = vfloor.f32 %v248
        %v251 = vfloor.f32 %v249
        %s252 = scalar_lea.vmem %s197, 16 [#allocation2]
        %v253 = vld [vmem:[%s252] sm:$0xff]
        %v254 = vld [vmem:[%s252 + $0x8] sm:$0xff]
        %v255 = vmul.f32 %v253, 255.0
        %v256 = vmul.f32 %v254, 255.0
        %v257 = vfloor.f32 %v255
        %v258 = vfloor.f32 %v256
        %s259 = scalar_lea.vmem %s197, 32 [#allocation2]
        %v260 = vld [vmem:[%s259] sm:$0xff]
        %v261 = vld [vmem:[%s259 + $0x8] sm:$0xff]
        %v262 = vmul.f32 %v260, 255.0
        %v263 = vmul.f32 %v261, 255.0
        %v264 = vfloor.f32 %v262
        %v265 = vfloor.f32 %v263
        %v266 = vmul.f32 %v250, 0.25678822
        %v267 = vmul.f32 %v251, 0.25678822
        %v268 = vmul.f32 %v257, 0.5041294
        %v269 = vmul.f32 %v258, 0.5041294
        %v270 = vadd.f32 %v266, %v268
        %v271 = vadd.f32 %v267, %v269
        %v272 = vmul.f32 %v264, 0.09790588
        %v273 = vmul.f32 %v265, 0.09790588
        %v274 = vadd.f32 %v270, %v272
        %v275 = vadd.f32 %v271, %v273
        %v276 = vadd.f32 %v274, 16.0
        %v277 = vadd.f32 %v275, 16.0
        %v278 = vround.ne.pseudo %v276
        %v279 = vround.ne.pseudo %v277
        %v280 = vld [vmem:[%s206] sm:$0xff]
        %v281 = vld [vmem:[%s206 + $0x8] sm:$0xff]
        %v282 = vmul.f32 %v280, 255.0
        %v283 = vmul.f32 %v281, 255.0
        %v284 = vfloor.f32 %v282
        %v285 = vfloor.f32 %v283
        %s286 = scalar_lea.vmem %s206, 16 [#allocation5]
        %v287 = vld [vmem:[%s286] sm:$0xff]
        %v288 = vld [vmem:[%s286 + $0x8] sm:$0xff]
        %v289 = vmul.f32 %v287, 255.0
        %v290 = vmul.f32 %v288, 255.0
        %v291 = vfloor.f32 %v289
        %v292 = vfloor.f32 %v290
        %s293 = scalar_lea.vmem %s206, 32 [#allocation5]
        %v294 = vld [vmem:[%s293] sm:$0xff]
        %v295 = vld [vmem:[%s293 + $0x8] sm:$0xff]
        %v296 = vmul.f32 %v294, 255.0
        %v297 = vmul.f32 %v295, 255.0
        %v298 = vfloor.f32 %v296
        %v299 = vfloor.f32 %v297
        %v300 = vmul.f32 %v284, 0.25678822
        %v301 = vmul.f32 %v285, 0.25678822
        %v302 = vmul.f32 %v291, 0.5041294
        %v303 = vmul.f32 %v292, 0.5041294
        %v304 = vadd.f32 %v300, %v302
        %v305 = vadd.f32 %v301, %v303
        %v306 = vmul.f32 %v298, 0.09790588
        %v307 = vmul.f32 %v299, 0.09790588
        %v308 = vadd.f32 %v304, %v306
        %v309 = vadd.f32 %v305, %v307
        %v310 = vadd.f32 %v308, 16.0
        %v311 = vadd.f32 %v309, 16.0
        %v312 = vround.ne.pseudo %v310
        %v313 = vround.ne.pseudo %v311
        %v314 = vsub.f32 %v278, %v312
        %v315 = vsub.f32 %v279, %v313
        %v316 = vmul.f32 %v314, %v314
        %v317 = vmul.f32 %v315, %v315
        %s318 = sadd.s32 %s26, %s27
        %s319 = smul.u32 %s318, 16
        %v320 = vlaneseq
        %v321 = vshrl.u32 %v320, 7
        %v322 = vadd.s32 %v321, 8
        %v323 = vstv %s319
        %v324 = vadd.s32 %v323, %v321
        %v325 = vadd.s32 %v323, %v322
        %vm326 = vcmp.lt.s32.totalorder %v324, 16
        %vm327 = vcmp.lt.s32.totalorder %v325, 16
        %v328 = vsel %vm326, %v316, 0.0
        %v329 = vsel %vm327, %v317, 0.0
        %v330 = vadd.f32 %v328, %v329
        %v331 = vld [vmem:[%s231] sm:$0xff]
        %v332 = vadd.f32 %v331, %v330
        %vm333 = vcmask 130048
        %334 = vst.msk [vmem:[%s231] sm:$0xff] %vm333, %v332
        %s335 = sand.u32 %s106, 1
        %s336 = scalar_lea.sflag [#allocation4], %s335
        %s337 = sand.u32 %s106, 1
        %s338 = smul.addr %s337, 8
        %s339 = scalar_lea.vmem [#allocation7], %s338
        // Predicated region
        $region41: #{tpu_custom_call.1} parent=27 // pred_check
          %p340 = pneg %p116
        $region42: #{tpu_custom_call.1} parent=27 // pred_check_branch
          %342 = sbr.rel (%p340) target = $region44
        $region43: #{tpu_custom_call.1} parent=27 // pred_region
          %s344 = ssub.s32 128, 128
          %345 = vsyncadd %s336, %s344
          %s346 = smul.addr %s26, 128
          %s347 = scalar_lea.hbm %s2, %s346
          %s349 = sshll.u32 %s339, 4
          %s350 = int_to_ptr.vmem [resolvable:$true] %s349
          %352 = dma.vmem_to_hbm [thread:$0]  %s350, 128, %s347, %s336
        $region44: #{tpu_custom_call.1} parent=27 // pred_fallthru
          _
      $region28: #{tpu_custom_call.1} parent=5 // pred_fallthru
        _
      %p353 = scmp.le.s32.totalorder 2, %s17
      // Predicated region
      $region45: #{tpu_custom_call.1} parent=5 // pred_check
        %p354 = pneg %p353
      $region46: #{tpu_custom_call.1} parent=5 // pred_check_branch
        %356 = sbr.rel (%p354) target = $region48
      $region47: #{tpu_custom_call.1} parent=5 // pred_region
        %s357 = ssub.s32 %s17, 2
        // Predicated region
        $region49: #{tpu_custom_call.1} parent=47 // pred_check
          %p358 = pneg %p122
        $region50: #{tpu_custom_call.1} parent=47 // pred_check_branch
          %360 = sbr.rel (%p358) target = $region52
        $region51: #{tpu_custom_call.1} parent=47 // pred_region
          %s361 = sand.u32 %s107, 1
          %s362 = scalar_lea.sflag [#allocation4], %s361
          %s363 = sand.u32 %s107, 1
          %s364 = smul.addr %s363, 8
          %s365 = scalar_lea.vmem [#allocation7], %s364
          %366 = dma.done %s362, 128
        $region52: #{tpu_custom_call.1} parent=47 // pred_fallthru
          _
      $region48: #{tpu_custom_call.1} parent=5 // pred_fallthru
        _
    $region6: #{tpu_custom_call.1} parent=1 // loop_footer
      %s21 = sadd.s32 1, %s17
    $region7: #{tpu_custom_call.1} parent=1 // loop_footer_branch
      %16 = sbr.rel target = $region3
    $region8: #{tpu_custom_call.1} parent=1 // loop_exit
      _
    %367 = vsyncpa [#allocation3], 1
    %s368 = scalar_lea.sflag [#allocation3], 1
    %369 = vsyncpa %s368, 1
    %370 = vsyncpa [#allocation6], 1
    %s371 = scalar_lea.sflag [#allocation6], 1
    %372 = vsyncpa %s371, 1
    %373 = vsyncpa [#allocation4], 1
    %s374 = scalar_lea.sflag [#allocation4], 1
    %375 = vsyncpa %s374, 1

</llo_original>
